<compile_context>
chip_gen: v7x
topology: tpu7x:2x2x1
jax: 0.10.0
libtpu: 0.0.40
codegen_flags: <defaults>
</compile_context>

<pallas_src>
import functools

import jax
import jax.numpy as jnp
from jax.experimental import pallas as pl
from jax.experimental.pallas import tpu as pltpu


def _mdn_kernel(x_ref, w1_ref, w2_ref, wh_ref, b_ref, out_ref, *, n_hidden, n_beta):
    """One batch tile: x_ref is (bb, D); out_ref is (3K, bb) (batch on lanes)."""
    H, K = n_hidden, n_beta

    # Natural-layout tile -> transpose once in-kernel (XLU slot, ~free here)
    # so every matmul and the output store are 128-lane dense over the batch.
    xT = x_ref[...].astype(jnp.float32).T                      # (D, bb)

    # Packed biases: [b1 (H) | b2 (H) | bpi,ba,bb (3K)] as column vectors.
    b = b_ref[...]                                             # (2H+3K, 1)
    b1 = b[0:H, :]
    b2 = b[H:2 * H, :]
    bh = b[2 * H:2 * H + 3 * K, :]

    # z_h = tanh(W1 @ x^T + b1); z_h = tanh(W2 @ z_h + b2)
    h1 = jnp.tanh(
        jnp.dot(w1_ref[...], xT, preferred_element_type=jnp.float32) + b1
    )                                                          # (H, bb)
    h2 = jnp.tanh(
        jnp.dot(w2_ref[...], h1, preferred_element_type=jnp.float32) + b2
    )                                                          # (H, bb)

    # Fused heads: one MXU pass -> (3K, bb) logits = [pi | alpha | beta] rows.
    logits = (
        jnp.dot(wh_ref[...], h2, preferred_element_type=jnp.float32) + bh
    )                                                          # (3K, bb)

    # pi = softmax over the K "pi" rows (numerically stable, EXACT divide so
    # rows sum to 1.0 to f32 precision).
    pi_logits = logits[0:K, :]
    m = jnp.max(pi_logits, axis=0, keepdims=True)
    e = jnp.exp(pi_logits - m)
    out_ref[0:K, :] = (e / jnp.sum(e, axis=0, keepdims=True)).astype(out_ref.dtype)

    # alpha = exp(.), beta = exp(.) — fused into one EUP pass / one store.
    out_ref[K:3 * K, :] = jnp.exp(logits[K:3 * K, :]).astype(out_ref.dtype)


def _round_up(a, m):
    return ((a + m - 1) // m) * m


def prepare_mdn_params(params):
    """Pack torch-layout params once (outside the jitted forward):
       fused head weight wh=(3K,H) and a single bias tensor b_all=(2H+3K,1)."""
    wh = jnp.concatenate([params["wpi"], params["wa"], params["wb"]], axis=0)
    b_all = jnp.concatenate(
        [params["b1"], params["b2"], params["bpi"], params["ba"], params["bb"]],
        axis=0,
    )[:, None]
    return dict(w1=params["w1"], w2=params["w2"], wh=wh, b_all=b_all)


@functools.partial(jax.jit, static_argnames=("block_b",))
def mdn_forward(x, prep, *, block_b=4096):
    """MDN forward pass via a Pallas TPU kernel.

    x: (B, inputdim) float32 (natural layout — no wrapper transpose/pad).
    prep: output of prepare_mdn_params().
    Returns (pi, alpha, beta), each (B, K) float32.
    """
    B, D = x.shape
    H = prep["w1"].shape[0]
    K = prep["wh"].shape[0] // 3
    # Sublane-aligned slicing of the fused bias/output requires multiples of 8.
    assert H % 8 == 0 and K % 8 == 0, "pad n_hidden / n_beta to a multiple of 8"

    # Lane-dense batch tile (multiple of 128), clamped to the (rounded) batch.
    # Large default amortizes per-grid-step overhead; Pallas masks the partial
    # last block, so B need not be a multiple of bb.
    bb = _round_up(min(block_b, _round_up(B, 128)), 128)
    grid = (pl.cdiv(B, bb),)

    flops = 2 * B * (D * H + H * H + H * 3 * K)
    transcendentals = B * (2 * H + 3 * K)
    bytes_accessed = 4 * (B * D + B * 3 * K + H * D + H * H + 3 * K * H + (2 * H + 3 * K))

    def const_spec(shape):
        # Grid-invariant operand: same (whole-array) block every step.
        return pl.BlockSpec(shape, lambda i: (0,) * len(shape))

    out_t = pl.pallas_call(
        functools.partial(_mdn_kernel, n_hidden=H, n_beta=K),
        out_shape=jax.ShapeDtypeStruct((3 * K, B), jnp.float32),
        grid_spec=pltpu.PrefetchScalarGridSpec(
            num_scalar_prefetch=0,
            grid=grid,
            in_specs=[
                pl.BlockSpec((bb, D), lambda i: (i, 0)),   # x, natural layout
                const_spec(prep["w1"].shape),              # (H, D)
                const_spec(prep["w2"].shape),              # (H, H)
                const_spec(prep["wh"].shape),              # (3K, H)
                const_spec(prep["b_all"].shape),           # (2H+3K, 1)
            ],
            out_specs=pl.BlockSpec((3 * K, bb), lambda i: (0, i)),
        ),
        compiler_params=pltpu.CompilerParams(
            dimension_semantics=("parallel",),
        ),
        cost_estimate=pl.CostEstimate(
            flops=flops,
            transcendentals=transcendentals,
            bytes_accessed=bytes_accessed,
        ),
    )(x, prep["w1"], prep["w2"], prep["wh"], prep["b_all"])

    # Single transpose of the whole slab, then three contiguous column slices.
    out = out_t.T                                           # (B, 3K)
    pi = out[:, 0:K]
    alpha = out[:, K:2 * K]
    beta = out[:, 2 * K:3 * K]
    return pi, alpha, beta


def init_mdn_params(key, inputdim, n_hidden, n_beta):
    """PyTorch-Linear-style init, torch layout: W is (out_features, in_features)."""
    ks = jax.random.split(key, 10)

    def linear(kw, kb, fan_in, fan_out):
        bound = 1.0 / (float(fan_in) ** 0.5)
        w = jax.random.uniform(kw, (fan_out, fan_in), jnp.float32, -bound, bound)
        b = jax.random.uniform(kb, (fan_out,), jnp.float32, -bound, bound)
        return w, b

    w1, b1 = linear(ks[0], ks[1], inputdim, n_hidden)
    w2, b2 = linear(ks[2], ks[3], n_hidden, n_hidden)
    wpi, bpi = linear(ks[4], ks[5], n_hidden, n_beta)
    wa, ba = linear(ks[6], ks[7], n_hidden, n_beta)
    wb, bb = linear(ks[8], ks[9], n_hidden, n_beta)
    return dict(w1=w1, b1=b1, w2=w2, b2=b2,
                wpi=wpi, bpi=bpi, wa=wa, ba=ba, wb=wb, bb=bb)


def mdn_reference(x, p):
    """Pure-JAX reference for correctness checking (torch-layout params)."""
    h = jnp.tanh(x @ p["w1"].T + p["b1"])
    h = jnp.tanh(h @ p["w2"].T + p["b2"])
    pi = jax.nn.softmax(h @ p["wpi"].T + p["bpi"], axis=-1)
    alpha = jnp.exp(h @ p["wa"].T + p["ba"])
    beta = jnp.exp(h @ p["wb"].T + p["bb"])
    return pi, alpha, beta


if __name__ == "__main__":
    inputdim, n_hidden, n_beta = 16, 32, 8
    batch = 300  # not a multiple of the tile -> exercises the partial-block path

    key = jax.random.PRNGKey(0)
    k_x, k_p = jax.random.split(key)
    x = jax.random.normal(k_x, (batch, inputdim), jnp.float32)
    params = init_mdn_params(k_p, inputdim, n_hidden, n_beta)
    prep = prepare_mdn_params(params)

    # block_b=128 -> grid of 3 steps with a masked partial last block.
    pi, alpha, beta = mdn_forward(x, prep, block_b=128)
    jax.block_until_ready((pi, alpha, beta))

    # Sanity check against the pure-JAX reference.
    pi_r, alpha_r, beta_r = mdn_reference(x, params)
    assert pi.shape == (batch, n_beta)
    assert alpha.shape == (batch, n_beta) and beta.shape == (batch, n_beta)
    assert jnp.allclose(pi, pi_r, atol=1e-4, rtol=1e-4)
    assert jnp.allclose(jnp.sum(pi, axis=-1), 1.0, atol=1e-5)  # exact softmax divide
    assert jnp.allclose(alpha, alpha_r, atol=1e-4, rtol=1e-4)
    assert jnp.allclose(beta, beta_r, atol=1e-4, rtol=1e-4)

    print("KERNEL_OK")
</pallas_src>

<mosaic_0001>
module attributes {stable_mosaic.version = 11 : i64} {
  func.func @_mdn_kernel(%arg0: i32, %arg1: memref<128x16xf32, #tpu.memory_space<vmem>>, %arg2: memref<32x16xf32, #tpu.memory_space<vmem>>, %arg3: memref<32x32xf32, #tpu.memory_space<vmem>>, %arg4: memref<24x32xf32, #tpu.memory_space<vmem>>, %arg5: memref<88x1xf32, #tpu.memory_space<vmem>>, %arg6: memref<24x128xf32, #tpu.memory_space<vmem>>) attributes {dimension_semantics = [#tpu.dimension_semantics<parallel>], iteration_bounds = array<i64: 3>, scalar_prefetch = 0 : i64, scratch_operands = 0 : i64, tpu.core_type = #tpu.core_type<tc>, window_params = [{transform_indices = @transform_0, window_bounds = array<i64: 128, 16>}, {pipeline_mode = #tpu.pipeline_mode<synchronous>, transform_indices = @transform_1, window_bounds = array<i64: 32, 16>}, {pipeline_mode = #tpu.pipeline_mode<synchronous>, transform_indices = @transform_2, window_bounds = array<i64: 32, 32>}, {pipeline_mode = #tpu.pipeline_mode<synchronous>, transform_indices = @transform_3, window_bounds = array<i64: 24, 32>}, {pipeline_mode = #tpu.pipeline_mode<synchronous>, transform_indices = @transform_4, window_bounds = array<i64: 88, 1>}, {transform_indices = @transform_5, window_bounds = array<i64: 24, 128>}]} {
    %c0 = arith.constant 0 : index
    %c0_0 = arith.constant 0 : index
    %0 = vector.load %arg1[%c0, %c0_0] : memref<128x16xf32, #tpu.memory_space<vmem>>, vector<128x16xf32>
    %1 = tpu.transpose %0, [1, 0] : vector<128x16xf32> -> vector<16x128xf32>
    %c0_1 = arith.constant 0 : index
    %c0_2 = arith.constant 0 : index
    %2 = vector.load %arg5[%c0_1, %c0_2] : memref<88x1xf32, #tpu.memory_space<vmem>>, vector<88x1xf32>
    %3 = vector.extract_strided_slice %2 {offsets = [0, 0], sizes = [32, 1], strides = [1, 1]} : vector<88x1xf32> to vector<32x1xf32>
    %4 = vector.extract_strided_slice %2 {offsets = [32, 0], sizes = [32, 1], strides = [1, 1]} : vector<88x1xf32> to vector<32x1xf32>
    %5 = vector.extract_strided_slice %2 {offsets = [64, 0], sizes = [24, 1], strides = [1, 1]} : vector<88x1xf32> to vector<24x1xf32>
    %c0_3 = arith.constant 0 : index
    %c0_4 = arith.constant 0 : index
    %6 = vector.load %arg2[%c0_3, %c0_4] : memref<32x16xf32, #tpu.memory_space<vmem>>, vector<32x16xf32>
    %cst = arith.constant dense<0.000000e+00> : vector<32x128xf32>
    %7 = tpu.matmul %6, %1, %cst {dimension_numbers = #tpu.dot_dimension_numbers<[1], [0], [0], [1], [0, 0, 1, 1], [], []>} : vector<32x16xf32>, vector<16x128xf32>, vector<32x128xf32> -> vector<32x128xf32>
    %8 = vector.broadcast %3 : vector<32x1xf32> to vector<32x128xf32>
    %9 = arith.addf %7, %8 : vector<32x128xf32>
    %10 = math.tanh %9 : vector<32x128xf32>
    %c0_5 = arith.constant 0 : index
    %c0_6 = arith.constant 0 : index
    %11 = vector.load %arg3[%c0_5, %c0_6] : memref<32x32xf32, #tpu.memory_space<vmem>>, vector<32x32xf32>
    %cst_7 = arith.constant dense<0.000000e+00> : vector<32x128xf32>
    %12 = tpu.matmul %11, %10, %cst_7 {dimension_numbers = #tpu.dot_dimension_numbers<[1], [0], [0], [1], [0, 0, 1, 1], [], []>} : vector<32x32xf32>, vector<32x128xf32>, vector<32x128xf32> -> vector<32x128xf32>
    %13 = vector.broadcast %4 : vector<32x1xf32> to vector<32x128xf32>
    %14 = arith.addf %12, %13 : vector<32x128xf32>
    %15 = math.tanh %14 : vector<32x128xf32>
    %c0_8 = arith.constant 0 : index
    %c0_9 = arith.constant 0 : index
    %16 = vector.load %arg4[%c0_8, %c0_9] : memref<24x32xf32, #tpu.memory_space<vmem>>, vector<24x32xf32>
    %cst_10 = arith.constant dense<0.000000e+00> : vector<24x128xf32>
    %17 = tpu.matmul %16, %15, %cst_10 {dimension_numbers = #tpu.dot_dimension_numbers<[1], [0], [0], [1], [0, 0, 1, 1], [], []>} : vector<24x32xf32>, vector<32x128xf32>, vector<24x128xf32> -> vector<24x128xf32>
    %18 = vector.broadcast %5 : vector<24x1xf32> to vector<24x128xf32>
    %19 = arith.addf %17, %18 : vector<24x128xf32>
    %20 = vector.extract_strided_slice %19 {offsets = [0, 0], sizes = [8, 128], strides = [1, 1]} : vector<24x128xf32> to vector<8x128xf32>
    %cst_11 = arith.constant dense<0xFF800000> : vector<128xf32>
    %21 = vector.multi_reduction <maximumf>, %20, %cst_11 [0] : vector<8x128xf32> to vector<128xf32>
    %22 = vector.shape_cast %21 : vector<128xf32> to vector<1x128xf32>
    %23 = vector.broadcast %22 : vector<1x128xf32> to vector<8x128xf32>
    %24 = arith.subf %20, %23 : vector<8x128xf32>
    %25 = math.exp %24 : vector<8x128xf32>
    %cst_12 = arith.constant dense<0.000000e+00> : vector<128xf32>
    %26 = vector.multi_reduction <add>, %25, %cst_12 [0] : vector<8x128xf32> to vector<128xf32>
    %27 = vector.shape_cast %26 : vector<128xf32> to vector<1x128xf32>
    %28 = vector.broadcast %27 : vector<1x128xf32> to vector<8x128xf32>
    %29 = arith.divf %25, %28 : vector<8x128xf32>
    %c0_13 = arith.constant 0 : index
    %c0_14 = arith.constant 0 : index
    %30 = vector.load %arg6[%c0_13, %c0_14] : memref<24x128xf32, #tpu.memory_space<vmem>>, vector<8x128xf32>
    tpu.vector_store %arg6[%c0_13, %c0_14], %29 {strides = array<i32>} : memref<24x128xf32, #tpu.memory_space<vmem>>, vector<8x128xf32>,
    %31 = vector.extract_strided_slice %19 {offsets = [8, 0], sizes = [16, 128], strides = [1, 1]} : vector<24x128xf32> to vector<16x128xf32>
    %32 = math.exp %31 : vector<16x128xf32>
    %c8 = arith.constant 8 : index
    %c0_15 = arith.constant 0 : index
    %33 = vector.load %arg6[%c8, %c0_15] : memref<24x128xf32, #tpu.memory_space<vmem>>, vector<16x128xf32>
    tpu.vector_store %arg6[%c8, %c0_15], %32 {strides = array<i32>} : memref<24x128xf32, #tpu.memory_space<vmem>>, vector<16x128xf32>,
    return
  }
  func.func @transform_0(%arg0: i32) -> (i32, i32) {
    %c0_i32 = arith.constant 0 : i32
    %c0_i32_0 = arith.constant 0 : i32
    return %arg0, %c0_i32 : i32, i32
  }
  func.func @transform_1(%arg0: i32) -> (i32, i32) {
    %c0_i32 = arith.constant 0 : i32
    %c0_i32_0 = arith.constant 0 : i32
    %c0_i32_1 = arith.constant 0 : i32
    return %c0_i32, %c0_i32_0 : i32, i32
  }
  func.func @transform_2(%arg0: i32) -> (i32, i32) {
    %c0_i32 = arith.constant 0 : i32
    %c0_i32_0 = arith.constant 0 : i32
    %c0_i32_1 = arith.constant 0 : i32
    return %c0_i32, %c0_i32_0 : i32, i32
  }
  func.func @transform_3(%arg0: i32) -> (i32, i32) {
    %c0_i32 = arith.constant 0 : i32
    %c0_i32_0 = arith.constant 0 : i32
    %c0_i32_1 = arith.constant 0 : i32
    return %c0_i32, %c0_i32_0 : i32, i32
  }
  func.func @transform_4(%arg0: i32) -> (i32, i32) {
    %c0_i32 = arith.constant 0 : i32
    %c0_i32_0 = arith.constant 0 : i32
    %c0_i32_1 = arith.constant 0 : i32
    return %c0_i32, %c0_i32_0 : i32, i32
  }
  func.func @transform_5(%arg0: i32) -> (i32, i32) {
    %c0_i32 = arith.constant 0 : i32
    %c0_i32_0 = arith.constant 0 : i32
    return %c0_i32, %arg0 : i32, i32
  }
}

</mosaic_0001>

<llo_original>
// kernel: mdn_forward.1
$region0: #{mdn_forward.1}
  #allocation0 [shape = 'u32[]', space=smem, size = 0x4, offset = 0x4, fixed_abs, tag = 'smem constant byte address 0x4 - core index']
  #allocation1 [shape = 'u32[144,128]{1,0:T(1,128)}', space=vmem, size = 0x12000, scoped, tag = 'internal scratch']
  %s0 = inlined_call_operand.vmem [shape: f32[300,16], index: 0, kind: input, shape index: {}]
  %s1 = inlined_call_operand.vmem [shape: f32[32,16], index: 1, kind: input, shape index: {}]
  %s2 = inlined_call_operand.vmem [shape: f32[32,32], index: 2, kind: input, shape index: {}]
  %s3 = inlined_call_operand.vmem [shape: f32[24,32], index: 3, kind: input, shape index: {}]
  %s4 = inlined_call_operand.vmem [shape: f32[88,1], index: 4, kind: input, shape index: {}]
  %s5 = inlined_call_operand.vmem [shape: f32[24,300], index: 5, kind: output, shape index: {}]
  %s6 = sld [smem:[#allocation0]]
  $region87: #{mdn_forward.1} parent=0
    _
  %s8 = ssub.s32 1, %s6
  %s9 = scalar_select 0, %s8, %s6
  $region1: #{mdn_forward.1} parent=0
    #allocation2 [shape = 'u8[24576]{0}', space=vmem, size = 0x6000, scoped, tag = 'output window, operand 0']
    loop: start=0, step=1, limit=5
    $region2: #{mdn_forward.1} parent=1 // loop_pre_header
      _
    $region3: #{mdn_forward.1} parent=1 // loop_header
      %s11 = sphi 0, %s15
      %p12 = scmp.ge.s32.totalorder %s11, 5
      %s21 = sphi 0, %s23
      %s24 = sphi 0, %s21
      %s25 = sphi 0, %s24
      %s41 = sphi 0, %s25
      %s45 = sphi 0, %s45
      %s47 = sphi 0, %s45
      %s48 = sphi 0, %s47
      %s62 = sphi 0, %s48
      %s66 = sphi 0, %s66
      %s68 = sphi 0, %s66
      %s69 = sphi 0, %s68
      %s83 = sphi 0, %s69
      %s87 = sphi 0, %s87
      %s89 = sphi 0, %s87
      %s90 = sphi 0, %s89
      %s104 = sphi 0, %s90
      %s108 = sphi 0, %s108
      %s110 = sphi 0, %s108
      %s111 = sphi 0, %s110
      %s125 = sphi 0, %s111
      %s131 = sphi 0, %s133
      %s134 = sphi 0, %s131
      %s135 = sphi 0, %s134
      %s151 = sphi 0, %s135
    $region4: #{mdn_forward.1} parent=1 // loop_header_branch
      %14 = sbr.rel (%p12) target = $region8
    $region5: #{mdn_forward.1} parent=1 // loop_body
      %s16 = ssub.s32 %s11, 1
      %s17 = ssub.s32 %s11, 2
      %s18 = sadd.s32 %s11, 1
      %s19 = ssub.s32 %s11, %s18
      %p20 = scmp.eq.s32.totalorder %s19, 0
      %s22 = sadd.s32 %s21, 1
      %s23 = scalar_select %p20, %s21, %s22
      %p26 = pneg %p20
      %p27 = scmp.eq.s32.totalorder %s11, 2
      %p28 = por %p26, %p27
      %p29 = scmp.ne.s32.totalorder %s21, %s24
      %p30 = scmp.eq.s32.totalorder %s11, 0
      %p31 = por %p29, %p30
      %p32 = scmp.ne.s32.totalorder %s21, %s24
      %p33 = scmp.eq.s32.totalorder %s16, 2
      %p34 = por %p32, %p33
      %p35 = scmp.ne.s32.totalorder %s24, %s25
      %p36 = scmp.eq.s32.totalorder %s16, 0
      %p37 = por %p35, %p36
      %p38 = scmp.ne.s32.totalorder %s24, %s25
      %p39 = scmp.eq.s32.totalorder %s17, 2
      %p40 = por %p38, %p39
      %p42 = scmp.ne.s32.totalorder %s25, %s41
      %p43 = scmp.eq.s32.totalorder %s17, 0
      %p44 = por %p42, %p43
      %s46 = sadd.s32 %s45, 1
      %p49 = scmp.eq.s32.totalorder %s11, 2
      %p50 = scmp.ne.s32.totalorder %s45, %s47
      %p51 = scmp.eq.s32.totalorder %s11, 0
      %p52 = por %p50, %p51
      %p53 = scmp.ne.s32.totalorder %s45, %s47
      %p54 = scmp.eq.s32.totalorder %s16, 2
      %p55 = por %p53, %p54
      %p56 = scmp.ne.s32.totalorder %s47, %s48
      %p57 = scmp.eq.s32.totalorder %s16, 0
      %p58 = por %p56, %p57
      %p59 = scmp.ne.s32.totalorder %s47, %s48
      %p60 = scmp.eq.s32.totalorder %s17, 2
      %p61 = por %p59, %p60
      %p63 = scmp.ne.s32.totalorder %s48, %s62
      %p64 = scmp.eq.s32.totalorder %s17, 0
      %p65 = por %p63, %p64
      %s67 = sadd.s32 %s66, 1
      %p70 = scmp.eq.s32.totalorder %s11, 2
      %p71 = scmp.ne.s32.totalorder %s66, %s68
      %p72 = scmp.eq.s32.totalorder %s11, 0
      %p73 = por %p71, %p72
      %p74 = scmp.ne.s32.totalorder %s66, %s68
      %p75 = scmp.eq.s32.totalorder %s16, 2
      %p76 = por %p74, %p75
      %p77 = scmp.ne.s32.totalorder %s68, %s69
      %p78 = scmp.eq.s32.totalorder %s16, 0
      %p79 = por %p77, %p78
      %p80 = scmp.ne.s32.totalorder %s68, %s69
      %p81 = scmp.eq.s32.totalorder %s17, 2
      %p82 = por %p80, %p81
      %p84 = scmp.ne.s32.totalorder %s69, %s83
      %p85 = scmp.eq.s32.totalorder %s17, 0
      %p86 = por %p84, %p85
      %s88 = sadd.s32 %s87, 1
      %p91 = scmp.eq.s32.totalorder %s11, 2
      %p92 = scmp.ne.s32.totalorder %s87, %s89
      %p93 = scmp.eq.s32.totalorder %s11, 0
      %p94 = por %p92, %p93
      %p95 = scmp.ne.s32.totalorder %s87, %s89
      %p96 = scmp.eq.s32.totalorder %s16, 2
      %p97 = por %p95, %p96
      %p98 = scmp.ne.s32.totalorder %s89, %s90
      %p99 = scmp.eq.s32.totalorder %s16, 0
      %p100 = por %p98, %p99
      %p101 = scmp.ne.s32.totalorder %s89, %s90
      %p102 = scmp.eq.s32.totalorder %s17, 2
      %p103 = por %p101, %p102
      %p105 = scmp.ne.s32.totalorder %s90, %s104
      %p106 = scmp.eq.s32.totalorder %s17, 0
      %p107 = por %p105, %p106
      %s109 = sadd.s32 %s108, 1
      %p112 = scmp.eq.s32.totalorder %s11, 2
      %p113 = scmp.ne.s32.totalorder %s108, %s110
      %p114 = scmp.eq.s32.totalorder %s11, 0
      %p115 = por %p113, %p114
      %p116 = scmp.ne.s32.totalorder %s108, %s110
      %p117 = scmp.eq.s32.totalorder %s16, 2
      %p118 = por %p116, %p117
      %p119 = scmp.ne.s32.totalorder %s110, %s111
      %p120 = scmp.eq.s32.totalorder %s16, 0
      %p121 = por %p119, %p120
      %p122 = scmp.ne.s32.totalorder %s110, %s111
      %p123 = scmp.eq.s32.totalorder %s17, 2
      %p124 = por %p122, %p123
      %p126 = scmp.ne.s32.totalorder %s111, %s125
      %p127 = scmp.eq.s32.totalorder %s17, 0
      %p128 = por %p126, %p127
      %s129 = ssub.s32 %s11, %s18
      %p130 = scmp.eq.s32.totalorder %s129, 0
      %s132 = sadd.s32 %s131, 1
      %s133 = scalar_select %p130, %s131, %s132
      %p136 = pneg %p130
      %p137 = scmp.eq.s32.totalorder %s11, 2
      %p138 = por %p136, %p137
      %p139 = scmp.ne.s32.totalorder %s131, %s134
      %p140 = scmp.eq.s32.totalorder %s11, 0
      %p141 = por %p139, %p140
      %p142 = scmp.ne.s32.totalorder %s131, %s134
      %p143 = scmp.eq.s32.totalorder %s16, 2
      %p144 = por %p142, %p143
      %p145 = scmp.ne.s32.totalorder %s134, %s135
      %p146 = scmp.eq.s32.totalorder %s16, 0
      %p147 = por %p145, %p146
      %p148 = scmp.ne.s32.totalorder %s134, %s135
      %p149 = scmp.eq.s32.totalorder %s17, 2
      %p150 = por %p148, %p149
      %p152 = scmp.ne.s32.totalorder %s135, %s151
      %p153 = scmp.eq.s32.totalorder %s17, 0
      %p154 = por %p152, %p153
      %p155 = scmp.le.s32.totalorder 1, %s11
      %p156 = scmp.lt.s32.totalorder %s11, 4
      %p157 = pnand %p155, %p156
      %p158 = pneg %p157
      // Predicated region
      $region9: #{mdn_forward.1} parent=5 // pred_check
        _
      $region10: #{mdn_forward.1} parent=5 // pred_check_branch
        %160 = sbr.rel (%p157) target = $region12
      $region11: #{mdn_forward.1} parent=5 // pred_region
        %s161 = ssub.s32 %s11, 1
        // Predicated region
        $region13: #{mdn_forward.1} parent=11 // pred_check
          %p162 = pneg %p58
        $region14: #{mdn_forward.1} parent=11 // pred_check_branch
          %164 = sbr.rel (%p162) target = $region16
        $region15: #{mdn_forward.1} parent=11 // pred_region
          _
        $region16: #{mdn_forward.1} parent=11 // pred_fallthru
          _
        // Predicated region
        $region17: #{mdn_forward.1} parent=11 // pred_check
          %p165 = pneg %p79
        $region18: #{mdn_forward.1} parent=11 // pred_check_branch
          %167 = sbr.rel (%p165) target = $region20
        $region19: #{mdn_forward.1} parent=11 // pred_region
          _
        $region20: #{mdn_forward.1} parent=11 // pred_fallthru
          _
        // Predicated region
        $region21: #{mdn_forward.1} parent=11 // pred_check
          %p168 = pneg %p100
        $region22: #{mdn_forward.1} parent=11 // pred_check_branch
          %170 = sbr.rel (%p168) target = $region24
        $region23: #{mdn_forward.1} parent=11 // pred_region
          _
        $region24: #{mdn_forward.1} parent=11 // pred_fallthru
          _
        // Predicated region
        $region25: #{mdn_forward.1} parent=11 // pred_check
          %p171 = pneg %p121
        $region26: #{mdn_forward.1} parent=11 // pred_check_branch
          %173 = sbr.rel (%p171) target = $region28
        $region27: #{mdn_forward.1} parent=11 // pred_region
          _
        $region28: #{mdn_forward.1} parent=11 // pred_fallthru
          _
      $region12: #{mdn_forward.1} parent=5 // pred_fallthru
        _
      %p174 = scmp.lt.s32.totalorder %s11, 3
      // Predicated region
      $region29: #{mdn_forward.1} parent=5 // pred_check
        %p175 = pneg %p174
      $region30: #{mdn_forward.1} parent=5 // pred_check_branch
        %177 = sbr.rel (%p175) target = $region32
      $region31: #{mdn_forward.1} parent=5 // pred_region
        // Predicated region
        $region33: #{mdn_forward.1} parent=31 // pred_check
          %p178 = pneg %p31
        $region34: #{mdn_forward.1} parent=31 // pred_check_branch
          %180 = sbr.rel (%p178) target = $region36
        $region35: #{mdn_forward.1} parent=31 // pred_region
          %s181 = smul.u32 16, %s11
          %s182 = ssub.s32 38, %s181
          %p183 = scmp.lt.s32.totalorder %s182, 16
          %s184 = scalar_select %p183, %s182, 16
          %s185 = smul.u32 128, %s184
          %p186 = scmp.lt.s32.totalorder %s181, 37
          %s187 = scalar_select %p186, %s181, 37
          %s188 = smul.addr %s187, 8
          %s189 = scalar_lea.vmem %s0, %s188
          %s190 = smul.u32 16, %s11
          %s191 = ssub.s32 38, %s190
          %p192 = scmp.lt.s32.totalorder %s191, 16
          %s193 = scalar_select %p192, %s191, 16
          %s194 = smul.u32 128, %s193
        $region36: #{mdn_forward.1} parent=31 // pred_fallthru
          _
      $region32: #{mdn_forward.1} parent=5 // pred_fallthru
        _
      %p195 = scmp.le.s32.totalorder 1, %s11
      %p196 = scmp.lt.s32.totalorder %s11, 4
      %p197 = pnand %p195, %p196
      %p198 = pneg %p197
      // Predicated region
      $region37: #{mdn_forward.1} parent=5 // pred_check
        _
      $region38: #{mdn_forward.1} parent=5 // pred_check_branch
        %200 = sbr.rel (%p197) target = $region40
      $region39: #{mdn_forward.1} parent=5 // pred_region
        %s201 = ssub.s32 %s11, 1
        %s202 = smul.u32 16, %s16
        %s203 = ssub.s32 38, %s202
        %p204 = scmp.lt.s32.totalorder %s203, 16
        %s205 = scalar_select %p204, %s203, 16
        %s206 = smul.u32 128, %s205
        %p207 = scmp.lt.s32.totalorder %s202, 37
        %s208 = scalar_select %p207, %s202, 37
        %s209 = smul.addr %s208, 8
        %s210 = scalar_lea.vmem %s0, %s209
        %p211 = pneg %p37
        %p212 = pneg %p34
        %p213 = pneg %p58
        %p214 = pneg %p55
        %p215 = pneg %p79
        %p216 = pneg %p76
        %p217 = pneg %p100
        %p218 = pneg %p97
        %p219 = pneg %p121
        %p220 = pneg %p118
        %p221 = pneg %p147
        %p222 = pneg %p144
        %s223 = sand.u32 %s134, 1
        %s224 = sand.u32 %s134, 1
        %s225 = smul.addr %s224, 24
        %s226 = scalar_lea.vmem [#allocation2], %s225
        %s227 = smul.u32 16, %s16
        %s228 = ssub.s32 38, %s227
        %p229 = scmp.lt.s32.totalorder %s228, 16
        %s230 = scalar_select %p229, %s228, 16
        %s231 = smul.u32 128, %s230
        %p232 = scmp.lt.s32.totalorder %s227, 37
        %s233 = scalar_select %p232, %s227, 37
        %s234 = smul.addr %s233, 8
        %s235 = scalar_lea.vmem %s0, %s234
        %s236 = smul.u32 16, %s16
        %s237 = ssub.s32 38, %s236
        %p238 = scmp.lt.s32.totalorder %s237, 16
        %s239 = scalar_select %p238, %s237, 16
        %s240 = smul.u32 128, %s239
        %v241 = vld [vmem:[%s235] sm:$0xff]
        %v242 = vld [vmem:[%s235 + $0x8] sm:$0xff]
        %v243 = vld [vmem:[%s235 + $0x10] sm:$0xff]
        %v244 = vld [vmem:[%s235 + $0x18] sm:$0xff]
        %v245 = vld [vmem:[%s235 + $0x20] sm:$0xff]
        %v246 = vld [vmem:[%s235 + $0x28] sm:$0xff]
        %v247 = vld [vmem:[%s235 + $0x30] sm:$0xff]
        %v248 = vld [vmem:[%s235 + $0x38] sm:$0xff]
        %v249 = vld [vmem:[%s235 + $0x40] sm:$0xff]
        %v250 = vld [vmem:[%s235 + $0x48] sm:$0xff]
        %v251 = vld [vmem:[%s235 + $0x50] sm:$0xff]
        %v252 = vld [vmem:[%s235 + $0x58] sm:$0xff]
        %v253 = vld [vmem:[%s235 + $0x60] sm:$0xff]
        %v254 = vld [vmem:[%s235 + $0x68] sm:$0xff]
        %v255 = vld [vmem:[%s235 + $0x70] sm:$0xff]
        %v256 = vld [vmem:[%s235 + $0x78] sm:$0xff]
        %v257 = vld [vmem:[%s4] sm:$0xff]
        %v258 = vld [vmem:[%s4 + $0x8] sm:$0xff]
        %v259 = vld [vmem:[%s4 + $0x10] sm:$0xff]
        %v260 = vld [vmem:[%s4 + $0x18] sm:$0xff]
        %v261 = vld [vmem:[%s4 + $0x20] sm:$0xff]
        %v262 = vld [vmem:[%s4 + $0x28] sm:$0xff]
        %v263 = vld [vmem:[%s4 + $0x30] sm:$0xff]
        %v264 = vld [vmem:[%s4 + $0x38] sm:$0xff]
        %v265 = vld [vmem:[%s4 + $0x40] sm:$0xff]
        %v266 = vld [vmem:[%s4 + $0x48] sm:$0xff]
        %v267 = vld [vmem:[%s4 + $0x50] sm:$0xff]
        %v268 = vld [vmem:[%s1] sm:$0xff]
        %v269 = vld [vmem:[%s1 + $0x8] sm:$0xff]
        %v270 = vld [vmem:[%s1 + $0x10] sm:$0xff]
        %v271 = vld [vmem:[%s1 + $0x18] sm:$0xff]
        %273 = vset.pattern.permute.xlu0 0
        %274 = vperm.xlu0 %273, %v257
        %v275 = vpop.permute.xlu0 %274
        %278 = vset.pattern.permute.xlu0 0
        %279 = vperm.xlu0 %278, %v258
        %v280 = vpop.permute.xlu0 %279
        %283 = vset.pattern.permute.xlu0 0
        %284 = vperm.xlu0 %283, %v259
        %v285 = vpop.permute.xlu0 %284
        %288 = vset.pattern.permute.xlu0 0
        %289 = vperm.xlu0 %288, %v260
        %v290 = vpop.permute.xlu0 %289
        %vm292 = vcmask 130048
        %v294 = vsel %vm292, %v268, 0
        %v297 = vsel %vm292, %v269, 0
        %v300 = vsel %vm292, %v270, 0
        %v303 = vsel %vm292, %v271, 0
        %v306 = vsel %vm292, %v241, 0
        %v309 = vsel %vm292, %v242, 0
        %v312 = vsel %vm292, %v243, 0
        %v315 = vsel %vm292, %v244, 0
        %v318 = vsel %vm292, %v245, 0
        %v321 = vsel %vm292, %v246, 0
        %v324 = vsel %vm292, %v247, 0
        %v327 = vsel %vm292, %v248, 0
        %v330 = vsel %vm292, %v249, 0
        %v333 = vsel %vm292, %v250, 0
        %v336 = vsel %vm292, %v251, 0
        %v339 = vsel %vm292, %v252, 0
        %v342 = vsel %vm292, %v253, 0
        %v345 = vsel %vm292, %v254, 0
        %v348 = vsel %vm292, %v255, 0
        %v351 = vsel %vm292, %v256, 0
        %353 = vmatprep.subr.mxu0 0.0
        %354 = vmatpush1.xpose.msra.mxu0 %v306
        %355 = vmatprep.subr.mxu0 0.0
        %356 = vmatpush1.xpose.msra.mxu0 %v309
        %357 = vmatprep.subr.mxu0 0.0
        %358 = vmatpush1.xpose.msra.mxu0 %v312
        %359 = vmatprep.subr.mxu0 0.0
        %360 = vmatpush1.xpose.msra.mxu0 %v315
        %361 = vmatprep.subr.mxu0 0.0
        %362 = vmatpush1.xpose.msra.mxu0 %v318
        %363 = vmatprep.subr.mxu0 0.0
        %364 = vmatpush1.xpose.msra.mxu0 %v321
        %365 = vmatprep.subr.mxu0 0.0
        %366 = vmatpush1.xpose.msra.mxu0 %v324
        %367 = vmatprep.subr.mxu0 0.0
        %368 = vmatpush1.xpose.msra.mxu0 %v327
        %369 = vmatprep.subr.mxu0 0.0
        %370 = vmatpush1.xpose.msra.mxu0 %v330
        %371 = vmatprep.subr.mxu0 0.0
        %372 = vmatpush1.xpose.msra.mxu0 %v333
        %373 = vmatprep.subr.mxu0 0.0
        %374 = vmatpush1.xpose.msra.mxu0 %v336
        %375 = vmatprep.subr.mxu0 0.0
        %376 = vmatpush1.xpose.msra.mxu0 %v339
        %377 = vmatprep.subr.mxu0 0.0
        %378 = vmatpush1.xpose.msra.mxu0 %v342
        %379 = vmatprep.subr.mxu0 0.0
        %380 = vmatpush1.xpose.msra.mxu0 %v345
        %381 = vmatprep.subr.mxu0 0.0
        %382 = vmatpush1.xpose.msra.mxu0 %v348
        %383 = vmatprep.subr.mxu0 0.0
        %384 = vmatpush1.xpose.msra.mxu0 %v351
        %385 = vmatprep.subr.mxu0 0.0
        %386 = vmatpush1.xpose.msra.mxu0 0.0
        %387 = vmatprep.subr.mxu0 0.0
        %388 = vmatpush1.xpose.msra.mxu0 0.0
        %389 = vmatprep.subr.mxu0 0.0
        %390 = vmatpush1.xpose.msra.mxu0 0.0
        %391 = vmatprep.subr.mxu0 0.0
        %392 = vmatpush1.xpose.msra.mxu0 0.0
        %393 = vmatprep.subr.mxu0 0.0
        %394 = vmatpush1.xpose.msra.mxu0 0.0
        %395 = vmatprep.subr.mxu0 0.0
        %396 = vmatpush1.xpose.msra.mxu0 0.0
        %397 = vmatprep.subr.mxu0 0.0
        %398 = vmatpush1.xpose.msra.mxu0 0.0
        %399 = vmatprep.subr.mxu0 0.0
        %400 = vmatpush1.xpose.msra.mxu0 0.0
        %401 = vmatprep.subr.mxu0 0.0
        %402 = vmatpush1.xpose.msra.mxu0 0.0
        %403 = vmatprep.subr.mxu0 0.0
        %404 = vmatpush1.xpose.msra.mxu0 0.0
        %405 = vmatprep.subr.mxu0 0.0
        %406 = vmatpush1.xpose.msra.mxu0 0.0
        %407 = vmatprep.subr.mxu0 0.0
        %408 = vmatpush1.xpose.msra.mxu0 0.0
        %409 = vmatprep.subr.mxu0 0.0
        %410 = vmatpush1.xpose.msra.mxu0 0.0
        %411 = vmatprep.subr.mxu0 0.0
        %412 = vmatpush1.xpose.msra.mxu0 0.0
        %413 = vmatprep.subr.mxu0 0.0
        %414 = vmatpush1.xpose.msra.mxu0 0.0
        %415 = vmatprep.subr.mxu0 0.0
        %416 = vmatpush1.xpose.msra.mxu0 0.0
        %417 = vmatprep.mubr.f32.mxu0 0.0
        %418 = vmatmul.mubr.f32.gmra.mrb[0].mxu0 %v294
        %v419 = vpop.f32.mrb[0].mxu0
        %v420 = vadd.f32 %v275, %v419
        %v421 = vpop.f32.mrb[0].mxu0
        %422 = vmatprep.mubr.f32.mxu0 0.0
        %423 = vmatmul.mubr.f32.gmra.mrb[0].mxu0 %v297
        %v424 = vpop.f32.mrb[0].mxu0
        %v425 = vadd.f32 %v280, %v424
        %v426 = vpop.f32.mrb[0].mxu0
        %427 = vmatprep.mubr.f32.mxu0 0.0
        %428 = vmatmul.mubr.f32.gmra.mrb[0].mxu0 %v300
        %v429 = vpop.f32.mrb[0].mxu0
        %v430 = vadd.f32 %v285, %v429
        %v431 = vpop.f32.mrb[0].mxu0
        %432 = vmatprep.mubr.f32.mxu0 0.0
        %433 = vmatmul.mubr.f32.gmra.mrb[0].mxu0 %v303
        %v434 = vpop.f32.mrb[0].mxu0
        %v435 = vadd.f32 %v290, %v434
        %v436 = vpop.f32.mrb[0].mxu0
        %437 = vdwg.mxu0
        %v438 = vtanh.pop %v420
        %v439 = vtanh.pop %v425
        %v440 = vtanh.pop %v430
        %v441 = vtanh.pop %v435
        %v442 = vld [vmem:[%s2] sm:$0xff]
        %v443 = vld [vmem:[%s2 + $0x8] sm:$0xff]
        %v444 = vld [vmem:[%s2 + $0x10] sm:$0xff]
        %v445 = vld [vmem:[%s2 + $0x18] sm:$0xff]
        %447 = vset.pattern.permute.xlu0 0
        %448 = vperm.xlu0 %447, %v261
        %v449 = vpop.permute.xlu0 %448
        %452 = vset.pattern.permute.xlu0 0
        %453 = vperm.xlu0 %452, %v262
        %v454 = vpop.permute.xlu0 %453
        %457 = vset.pattern.permute.xlu0 0
        %458 = vperm.xlu0 %457, %v263
        %v459 = vpop.permute.xlu0 %458
        %462 = vset.pattern.permute.xlu0 0
        %463 = vperm.xlu0 %462, %v264
        %v464 = vpop.permute.xlu0 %463
        %vm466 = vcmask 261120
        %v468 = vsel %vm466, %v442, 0
        %v471 = vsel %vm466, %v443, 0
        %v474 = vsel %vm466, %v444, 0
        %v477 = vsel %vm466, %v445, 0
        %479 = vmatprep.subr.mxu0 0.0
        %480 = vmatpush1.msra.mxu0 %v438
        %481 = vmatprep.subr.mxu0 0.0
        %482 = vmatpush1.msra.mxu0 %v439
        %483 = vmatprep.subr.mxu0 0.0
        %484 = vmatpush1.msra.mxu0 %v440
        %485 = vmatprep.subr.mxu0 0.0
        %486 = vmatpush1.msra.mxu0 %v441
        %487 = vmatprep.subr.mxu0 0.0
        %488 = vmatpush1.msra.mxu0 0.0
        %489 = vmatprep.subr.mxu0 0.0
        %490 = vmatpush1.msra.mxu0 0.0
        %491 = vmatprep.subr.mxu0 0.0
        %492 = vmatpush1.msra.mxu0 0.0
        %493 = vmatprep.subr.mxu0 0.0
        %494 = vmatpush1.msra.mxu0 0.0
        %495 = vmatprep.subr.mxu0 0.0
        %496 = vmatpush1.msra.mxu0 0.0
        %497 = vmatprep.subr.mxu0 0.0
        %498 = vmatpush1.msra.mxu0 0.0
        %499 = vmatprep.subr.mxu0 0.0
        %500 = vmatpush1.msra.mxu0 0.0
        %501 = vmatprep.subr.mxu0 0.0
        %502 = vmatpush1.msra.mxu0 0.0
        %503 = vmatprep.subr.mxu0 0.0
        %504 = vmatpush1.msra.mxu0 0.0
        %505 = vmatprep.subr.mxu0 0.0
        %506 = vmatpush1.msra.mxu0 0.0
        %507 = vmatprep.subr.mxu0 0.0
        %508 = vmatpush1.msra.mxu0 0.0
        %509 = vmatprep.subr.mxu0 0.0
        %510 = vmatpush1.msra.mxu0 0.0
        %511 = vmatprep.subr.mxu0 0.0
        %512 = vmatpush1.msra.mxu0 0.0
        %513 = vmatprep.subr.mxu0 0.0
        %514 = vmatpush1.msra.mxu0 0.0
        %515 = vmatprep.subr.mxu0 0.0
        %516 = vmatpush1.msra.mxu0 0.0
        %517 = vmatprep.subr.mxu0 0.0
        %518 = vmatpush1.msra.mxu0 0.0
        %519 = vmatprep.subr.mxu0 0.0
        %520 = vmatpush1.msra.mxu0 0.0
        %521 = vmatprep.subr.mxu0 0.0
        %522 = vmatpush1.msra.mxu0 0.0
        %523 = vmatprep.subr.mxu0 0.0
        %524 = vmatpush1.msra.mxu0 0.0
        %525 = vmatprep.subr.mxu0 0.0
        %526 = vmatpush1.msra.mxu0 0.0
        %527 = vmatprep.subr.mxu0 0.0
        %528 = vmatpush1.msra.mxu0 0.0
        %529 = vmatprep.subr.mxu0 0.0
        %530 = vmatpush1.msra.mxu0 0.0
        %531 = vmatprep.subr.mxu0 0.0
        %532 = vmatpush1.msra.mxu0 0.0
        %533 = vmatprep.subr.mxu0 0.0
        %534 = vmatpush1.msra.mxu0 0.0
        %535 = vmatprep.subr.mxu0 0.0
        %536 = vmatpush1.msra.mxu0 0.0
        %537 = vmatprep.subr.mxu0 0.0
        %538 = vmatpush1.msra.mxu0 0.0
        %539 = vmatprep.subr.mxu0 0.0
        %540 = vmatpush1.msra.mxu0 0.0
        %541 = vmatprep.subr.mxu0 0.0
        %542 = vmatpush1.msra.mxu0 0.0
        %543 = vmatprep.mubr.f32.mxu0 0.0
        %544 = vmatmul.mubr.f32.gmra.mrb[0].mxu0 %v468
        %v545 = vpop.f32.mrb[0].mxu0
        %v546 = vadd.f32 %v449, %v545
        %v547 = vpop.f32.mrb[0].mxu0
        %548 = vmatprep.mubr.f32.mxu0 0.0
        %549 = vmatmul.mubr.f32.gmra.mrb[0].mxu0 %v471
        %v550 = vpop.f32.mrb[0].mxu0
        %v551 = vadd.f32 %v454, %v550
        %v552 = vpop.f32.mrb[0].mxu0
        %553 = vmatprep.mubr.f32.mxu0 0.0
        %554 = vmatmul.mubr.f32.gmra.mrb[0].mxu0 %v474
        %v555 = vpop.f32.mrb[0].mxu0
        %v556 = vadd.f32 %v459, %v555
        %v557 = vpop.f32.mrb[0].mxu0
        %558 = vmatprep.mubr.f32.mxu0 0.0
        %559 = vmatmul.mubr.f32.gmra.mrb[0].mxu0 %v477
        %v560 = vpop.f32.mrb[0].mxu0
        %v561 = vadd.f32 %v464, %v560
        %v562 = vpop.f32.mrb[0].mxu0
        %563 = vdwg.mxu0
        %v564 = vtanh.pop %v546
        %v565 = vtanh.pop %v551
        %v566 = vtanh.pop %v556
        %v567 = vtanh.pop %v561
        %v568 = vld [vmem:[%s3] sm:$0xff]
        %v569 = vld [vmem:[%s3 + $0x8] sm:$0xff]
        %v570 = vld [vmem:[%s3 + $0x10] sm:$0xff]
        %572 = vset.pattern.permute.xlu0 0
        %573 = vperm.xlu0 %572, %v265
        %v574 = vpop.permute.xlu0 %573
        %577 = vset.pattern.permute.xlu0 0
        %578 = vperm.xlu0 %577, %v266
        %v579 = vpop.permute.xlu0 %578
        %582 = vset.pattern.permute.xlu0 0
        %583 = vperm.xlu0 %582, %v267
        %v584 = vpop.permute.xlu0 %583
        %v587 = vsel %vm466, %v568, 0
        %v590 = vsel %vm466, %v569, 0
        %v593 = vsel %vm466, %v570, 0
        %595 = vmatprep.subr.mxu0 0.0
        %596 = vmatpush1.msra.mxu0 %v564
        %597 = vmatprep.subr.mxu0 0.0
        %598 = vmatpush1.msra.mxu0 %v565
        %599 = vmatprep.subr.mxu0 0.0
        %600 = vmatpush1.msra.mxu0 %v566
        %601 = vmatprep.subr.mxu0 0.0
        %602 = vmatpush1.msra.mxu0 %v567
        %603 = vmatprep.subr.mxu0 0.0
        %604 = vmatpush1.msra.mxu0 0.0
        %605 = vmatprep.subr.mxu0 0.0
        %606 = vmatpush1.msra.mxu0 0.0
        %607 = vmatprep.subr.mxu0 0.0
        %608 = vmatpush1.msra.mxu0 0.0
        %609 = vmatprep.subr.mxu0 0.0
        %610 = vmatpush1.msra.mxu0 0.0
        %611 = vmatprep.subr.mxu0 0.0
        %612 = vmatpush1.msra.mxu0 0.0
        %613 = vmatprep.subr.mxu0 0.0
        %614 = vmatpush1.msra.mxu0 0.0
        %615 = vmatprep.subr.mxu0 0.0
        %616 = vmatpush1.msra.mxu0 0.0
        %617 = vmatprep.subr.mxu0 0.0
        %618 = vmatpush1.msra.mxu0 0.0
        %619 = vmatprep.subr.mxu0 0.0
        %620 = vmatpush1.msra.mxu0 0.0
        %621 = vmatprep.subr.mxu0 0.0
        %622 = vmatpush1.msra.mxu0 0.0
        %623 = vmatprep.subr.mxu0 0.0
        %624 = vmatpush1.msra.mxu0 0.0
        %625 = vmatprep.subr.mxu0 0.0
        %626 = vmatpush1.msra.mxu0 0.0
        %627 = vmatprep.subr.mxu0 0.0
        %628 = vmatpush1.msra.mxu0 0.0
        %629 = vmatprep.subr.mxu0 0.0
        %630 = vmatpush1.msra.mxu0 0.0
        %631 = vmatprep.subr.mxu0 0.0
        %632 = vmatpush1.msra.mxu0 0.0
        %633 = vmatprep.subr.mxu0 0.0
        %634 = vmatpush1.msra.mxu0 0.0
        %635 = vmatprep.subr.mxu0 0.0
        %636 = vmatpush1.msra.mxu0 0.0
        %637 = vmatprep.subr.mxu0 0.0
        %638 = vmatpush1.msra.mxu0 0.0
        %639 = vmatprep.subr.mxu0 0.0
        %640 = vmatpush1.msra.mxu0 0.0
        %641 = vmatprep.subr.mxu0 0.0
        %642 = vmatpush1.msra.mxu0 0.0
        %643 = vmatprep.subr.mxu0 0.0
        %644 = vmatpush1.msra.mxu0 0.0
        %645 = vmatprep.subr.mxu0 0.0
        %646 = vmatpush1.msra.mxu0 0.0
        %647 = vmatprep.subr.mxu0 0.0
        %648 = vmatpush1.msra.mxu0 0.0
        %649 = vmatprep.subr.mxu0 0.0
        %650 = vmatpush1.msra.mxu0 0.0
        %651 = vmatprep.subr.mxu0 0.0
        %652 = vmatpush1.msra.mxu0 0.0
        %653 = vmatprep.subr.mxu0 0.0
        %654 = vmatpush1.msra.mxu0 0.0
        %655 = vmatprep.subr.mxu0 0.0
        %656 = vmatpush1.msra.mxu0 0.0
        %657 = vmatprep.subr.mxu0 0.0
        %658 = vmatpush1.msra.mxu0 0.0
        %659 = vmatprep.mubr.f32.mxu0 0.0
        %660 = vmatmul.mubr.f32.gmra.mrb[0].mxu0 %v587
        %v661 = vpop.f32.mrb[0].mxu0
        %v662 = vadd.f32 %v574, %v661
        %v663 = vpop.f32.mrb[0].mxu0
        %664 = vmatprep.mubr.f32.mxu0 0.0
        %665 = vmatmul.mubr.f32.gmra.mrb[0].mxu0 %v590
        %v666 = vpop.f32.mrb[0].mxu0
        %v667 = vadd.f32 %v579, %v666
        %v668 = vpop.f32.mrb[0].mxu0
        %669 = vmatprep.mubr.f32.mxu0 0.0
        %670 = vmatmul.mubr.f32.gmra.mrb[0].mxu0 %v593
        %v671 = vpop.f32.mrb[0].mxu0
        %v672 = vadd.f32 %v584, %v671
        %v673 = vpop.f32.mrb[0].mxu0
        %674 = vdwg.mxu0
        %v675 = vrot.slane %v662, 4
        %v676 = vmax.f32 %v662, %v675
        %v677 = vrot.slane %v676, 2
        %v678 = vmax.f32 %v676, %v677
        %v679 = vrot.slane %v678, 1
        %v680 = vmax.f32 %v678, %v679
        %v681 = vsub.f32 %v662, %v680
        %v682 = vmul.f32 %v681, 1.442695
        %v683 = vpow.pop %v682
        %v684 = vrot.slane %v683, 4
        %v685 = vadd.f32 %v683, %v684
        %v686 = vrot.slane %v685, 2
        %v687 = vadd.f32 %v685, %v686
        %v688 = vrot.slane %v687, 1
        %v689 = vadd.f32 %v687, %v688
        %v690 = vrcp.pop %v689
        %v691 = vmul.f32 %v683, %v690
        %692 = vst [vmem:[%s226] sm:$0xff] %v691
        %v693 = vmul.f32 %v667, 1.442695
        %v694 = vpow.pop %v693
        %v695 = vmul.f32 %v672, 1.442695
        %v696 = vpow.pop %v695
        %697 = vst [vmem:[%s226 + $0x8] sm:$0xff] %v694
        %698 = vst [vmem:[%s226 + $0x10] sm:$0xff] %v696
        %s699 = sand.u32 %s134, 1
        %s700 = sand.u32 %s134, 1
        %s701 = smul.addr %s700, 24
        %s702 = scalar_lea.vmem [#allocation2], %s701
        // Predicated region
        $region41: #{mdn_forward.1} parent=39 // pred_check
          %p703 = pneg %p144
        $region42: #{mdn_forward.1} parent=39 // pred_check_branch
          %705 = sbr.rel (%p703) target = $region44
        $region43: #{mdn_forward.1} parent=39 // pred_region
          %s706 = smul.addr %s16, 8
          %s707 = scalar_lea.vmem %s5, %s706
          // Predicated region
          $region45: #{mdn_forward.1} parent=43 // pred_check
            _
          $region46: #{mdn_forward.1} parent=43 // pred_check_branch
            %709 = sbr.rel (0) target = $region48
          $region47: #{mdn_forward.1} parent=43 // pred_region
            // Predicated region
            $region49: #{mdn_forward.1} parent=47 // pred_check
              _
            $region50: #{mdn_forward.1} parent=47 // pred_check_branch
              %711 = sbr.rel (0) target = $region52
            $region51: #{mdn_forward.1} parent=47 // pred_region
              // Predicated region
              $region64: #{mdn_forward.1} parent=51 // pred_check
                _
              $region65: #{mdn_forward.1} parent=51 // pred_check_branch
                %730 = sbr.rel (0) target = $region67
              $region66: #{mdn_forward.1} parent=51 // pred_region
                loop: start=0, step=1, limit=1
                $region68: #{mdn_forward.1} parent=66 // loop_pre_header
                  _
                $region69: #{mdn_forward.1} parent=66 // loop_header
                  %s732 = sphi 0, %s736
                  %p733 = scmp.ge.s32.totalorder %s732, 1
                  %s737 = sphi %s702, %s702
                  %s738 = sphi %s707, %s707
                $region70: #{mdn_forward.1} parent=66 // loop_header_branch
                  %735 = sbr.rel (%p733) target = $region74
                $region71: #{mdn_forward.1} parent=66 // loop_body
                  %v739 = vld [vmem:[%s737] sm:$0xff]
                  %740 = vst [vmem:[%s738] sm:$0xff] %v739
                  %v741 = vld [vmem:[%s737 + $0x8] sm:$0xff]
                  %742 = vst [vmem:[%s738 + $0x18] sm:$0xff] %v741
                  %v743 = vld [vmem:[%s737 + $0x10] sm:$0xff]
                  %744 = vst [vmem:[%s738 + $0x30] sm:$0xff] %v743
                $region72: #{mdn_forward.1} parent=66 // loop_footer
                  %s736 = sadd.s32 1, %s732
                $region73: #{mdn_forward.1} parent=66 // loop_footer_branch
                  %731 = sbr.rel target = $region69
                $region74: #{mdn_forward.1} parent=66 // loop_exit
                  _
              $region67: #{mdn_forward.1} parent=51 // pred_fallthru
                _
              // Predicated region
              $region75: #{mdn_forward.1} parent=51 // pred_check
                _
              $region76: #{mdn_forward.1} parent=51 // pred_check_branch
                %746 = sbr.rel target = $region78
              $region77: #{mdn_forward.1} parent=51 // pred_region
                _
              $region78: #{mdn_forward.1} parent=51 // pred_fallthru
                _
            $region52: #{mdn_forward.1} parent=47 // pred_fallthru
              _
            // Predicated region
            $region53: #{mdn_forward.1} parent=47 // pred_check
              _
            $region54: #{mdn_forward.1} parent=47 // pred_check_branch
              %713 = sbr.rel target = $region56
            $region55: #{mdn_forward.1} parent=47 // pred_region
              loop: start=0, step=1, limit=1
              $region57: #{mdn_forward.1} parent=55 // loop_pre_header
                _
              $region58: #{mdn_forward.1} parent=55 // loop_header
                %s716 = sphi 0, %s720
                %p717 = scmp.ge.s32.totalorder %s716, 1
                %s721 = sphi %s702, %s702
                %s722 = sphi %s707, %s707
              $region59: #{mdn_forward.1} parent=55 // loop_header_branch
                %719 = sbr.rel (%p717) target = $region63
              $region60: #{mdn_forward.1} parent=55 // loop_body
                %v723 = vld [vmem:[%s721] sm:$0xff]
                %724 = vst [vmem:[%s722] sm:$0xff] %v723
                %v725 = vld [vmem:[%s721 + $0x8] sm:$0xff]
                %726 = vst [vmem:[%s722 + $0x18] sm:$0xff] %v725
                %v727 = vld [vmem:[%s721 + $0x10] sm:$0xff]
                %728 = vst [vmem:[%s722 + $0x30] sm:$0xff] %v727
              $region61: #{mdn_forward.1} parent=55 // loop_footer
                %s720 = sadd.s32 1, %s716
              $region62: #{mdn_forward.1} parent=55 // loop_footer_branch
                %715 = sbr.rel target = $region58
              $region63: #{mdn_forward.1} parent=55 // loop_exit
                _
            $region56: #{mdn_forward.1} parent=47 // pred_fallthru
              _
          $region48: #{mdn_forward.1} parent=43 // pred_fallthru
            _
          %747 = vnop
        $region44: #{mdn_forward.1} parent=39 // pred_fallthru
          _
      $region40: #{mdn_forward.1} parent=5 // pred_fallthru
        _
      %p748 = scmp.le.s32.totalorder 2, %s11
      // Predicated region
      $region79: #{mdn_forward.1} parent=5 // pred_check
        %p749 = pneg %p748
      $region80: #{mdn_forward.1} parent=5 // pred_check_branch
        %751 = sbr.rel (%p749) target = $region82
      $region81: #{mdn_forward.1} parent=5 // pred_region
        %s752 = ssub.s32 %s11, 2
        // Predicated region
        $region83: #{mdn_forward.1} parent=81 // pred_check
          %p753 = pneg %p150
        $region84: #{mdn_forward.1} parent=81 // pred_check_branch
          %755 = sbr.rel (%p753) target = $region86
        $region85: #{mdn_forward.1} parent=81 // pred_region
          %s756 = sand.u32 %s135, 1
          %s757 = sand.u32 %s135, 1
          %s758 = smul.addr %s757, 24
          %s759 = scalar_lea.vmem [#allocation2], %s758
        $region86: #{mdn_forward.1} parent=81 // pred_fallthru
          _
      $region82: #{mdn_forward.1} parent=5 // pred_fallthru
        _
    $region6: #{mdn_forward.1} parent=1 // loop_footer
      %s15 = sadd.s32 1, %s11
    $region7: #{mdn_forward.1} parent=1 // loop_footer_branch
      %10 = sbr.rel target = $region3
    $region8: #{mdn_forward.1} parent=1 // loop_exit
      _

</llo_original>
